<compile_context>
chip_gen: v7x
topology: tpu7x:2x2x1
jax: 0.10.0
libtpu: 0.0.40
codegen_flags: <defaults>
</compile_context>

<pallas_src>
import numpy as np
import jax
import jax.numpy as jnp
from jax import lax
from jax.experimental import pallas as pl
from jax.experimental.pallas import tpu as pltpu


def _sigma0(sigma, ndim=2):
    """The torch module only uses sigma[0] in the exponent; mirror that."""
    if isinstance(sigma, (float, int)):
        return float(sigma)
    assert len(sigma) == ndim, f"sigma is {sigma}, ndim is {ndim}"
    return float(sigma[0])


def _gaussian_stencil_2d(sigma, kernel_size):
    """2D stencil identical to the torch module's init (for the reference)."""
    s0 = _sigma0(sigma, 2)
    k = np.zeros((kernel_size, kernel_size), dtype=np.float64)
    c = kernel_size // 2
    for i in range(kernel_size):
        for j in range(kernel_size):
            k[i, j] = np.exp(-0.5 * ((i - c) ** 2 + (j - c) ** 2) / s0 ** 2)
    return (k / np.sum(k)).astype(np.float32)


def _gaussian_taps_1d(sigma, kernel_size):
    """1D separable factor g with outer(g, g) == normalized 2D stencil."""
    s0 = _sigma0(sigma, 2)
    c = kernel_size // 2
    g = np.exp(-0.5 * (np.arange(kernel_size, dtype=np.float64) - c) ** 2 / s0 ** 2)
    g = g / g.sum()
    return [float(v) for v in g]


def _tpu_vmem_bytes():
    """Generation-aware VMEM capacity; conservative (v7x-sized) fallback."""
    try:
        return int(pltpu.get_tpu_info().vmem_capacity_bytes)
    except Exception:
        return 64 * 1024 * 1024


def _pick_tile_rows(H, C, W, itemsize, budget_bytes, hb):
    """Rows per spatial tile: a multiple of `hb` sized so the (C, TH, W) input
    block stays under budget_bytes; capped at round_up(H, hb) (single tile)."""
    h_cover = pl.cdiv(H, hb) * hb
    max_rows = max(hb, budget_bytes // max(1, C * W * itemsize))
    th = min(h_cover, (max_rows // hb) * hb)
    return max(th, hb)


def _make_fused_kernel(C, H, W, KS, TH, taps, tiled, HB, RC=8):
    """Fused channel-sum + separable Gaussian blur over one (b, row-tile) step.

    Refs (tiled=True):  x(C,TH,W), prev(C,HB,W), next(C,HB,W), out(C,TH,W),
                        scratch window (TH+2p, W+2p) f32.
    Refs (tiled=False): x(C,TH,W), out(C,TH,W), scratch window.
    """
    pad = KS // 2
    half = KS // 2
    chunks = TH // RC
    # The last row-tile contains rows >= H only when TH does not divide H.
    cur_mask_needed = (H % TH) != 0

    def kernel(*refs):
        if tiled:
            x_ref, prev_ref, next_ref, o_ref, s_ref = refs
        else:
            x_ref, o_ref, s_ref = refs

        h = pl.program_id(1)
        r0 = h * TH

        # --- 1. zero the left/right lane-halo columns of the window scratch ---
        zcol = jnp.zeros((TH + 2 * pad, pad), jnp.float32)
        s_ref[:, 0:pad] = zcol
        s_ref[:, pad + W:pad + W + pad] = zcol

        # --- 2. channel sum of the current tile into the window center --------
        acc = x_ref[0].astype(jnp.float32)
        for c in range(1, C):
            acc = acc + x_ref[c].astype(jnp.float32)
        if cur_mask_needed:
            rows = r0 + lax.broadcasted_iota(jnp.int32, (TH, 1), 0)
            acc = jnp.where(rows < H, acc, 0.0)        # zero rows past the image
        s_ref[pad:pad + TH, pad:pad + W] = acc

        # --- 3. top/bottom row halos (zero-padded at the image border) --------
        if tiled:
            pacc = prev_ref[0, HB - pad:HB, :].astype(jnp.float32)
            nacc = next_ref[0, 0:pad, :].astype(jnp.float32)
            for c in range(1, C):
                pacc = pacc + prev_ref[c, HB - pad:HB, :].astype(jnp.float32)
                nacc = nacc + next_ref[c, 0:pad, :].astype(jnp.float32)
            hrow = lax.broadcasted_iota(jnp.int32, (pad, 1), 0)
            s_ref[0:pad, pad:pad + W] = jnp.where(r0 - pad + hrow >= 0, pacc, 0.0)
            s_ref[pad + TH:pad + TH + pad, pad:pad + W] = (
                jnp.where(r0 + TH + hrow < H, nacc, 0.0))
        else:
            zrow = jnp.zeros((pad, W), jnp.float32)
            s_ref[0:pad, pad:pad + W] = zrow
            s_ref[pad + TH:pad + TH + pad, pad:pad + W] = zrow

        # --- 4. separable taps, evaluated in RC-row chunks from ref slices ----
        # Symmetry fold: g[d] == g[KS-1-d], so 3 multiplies per pass for KS=5.
        def do_chunk(rc0):
            # Vertical (sublane) pass: loads come straight from the VMEM window.
            v = taps[half] * s_ref[pl.ds(rc0 + half, RC), :]
            for d in range(half):
                v = v + taps[d] * (s_ref[pl.ds(rc0 + d, RC), :] +
                                   s_ref[pl.ds(rc0 + (KS - 1 - d), RC), :])
            # Horizontal (lane) pass on the small (RC, W+2p) register tile.
            a = taps[half] * v[:, half:half + W]
            for d in range(half):
                a = a + taps[d] * (v[:, d:d + W] +
                                   v[:, (KS - 1 - d):(KS - 1 - d) + W])
            out = a.astype(o_ref.dtype)
            # Every output channel is identical (dense expanded weight); store
            # per channel to keep live vregs at ~one chunk.
            for c in range(C):
                o_ref[c, pl.ds(rc0, RC), :] = out
            # TODO(synk): for W < 128 these are lane-masked stores; a
            # lane-packed output layout (several rows per 128-lane slab) would
            # speed up the writeback path for tiny images.

        if chunks <= 8:
            for ci in range(chunks):
                do_chunk(ci * RC)
        else:
            @pl.loop(0, chunks)
            def _(ci):
                do_chunk(pl.multiple_of(ci * RC, RC))

    return kernel


def gaussian_filter_2d(x, sigma=1.0, kernel_size=5, max_tile_rows=None):
    """x: (..., C, H, W). Returns same shape, matching torch GuassianFilter."""
    assert kernel_size % 2 == 1 and kernel_size >= 3, \
        "kernel_size must be an odd integer >= 3"
    orig_shape = x.shape
    C, H, W = x.shape[-3], x.shape[-2], x.shape[-1]
    lead = x.shape[:-3]
    B = int(np.prod(lead)) if len(lead) > 0 else 1
    x4 = x.reshape(B, C, H, W)

    pad = kernel_size // 2
    HB = 8 * max(1, pl.cdiv(pad, 8))     # halo row-block height (>= pad, mult of 8)
    itemsize = x.dtype.itemsize

    vmem_cap = _tpu_vmem_bytes()
    # ~2.7 MiB/block on v7x (64 MiB VMEM), ~5.3 MiB on v5e/v6e (128 MiB).
    budget = max(512 * 1024, vmem_cap // 24)
    TH = _pick_tile_rows(H, C, W, itemsize, budget, HB)
    if max_tile_rows is not None:        # test hook to force the tiled path
        TH = min(TH, max(HB, (max_tile_rows // HB) * HB))
    NH = pl.cdiv(H, TH)                  # cdiv grid: partial last tile is masked
    tiled = NH > 1
    taps = _gaussian_taps_1d(sigma, kernel_size)

    kernel = _make_fused_kernel(C, H, W, kernel_size, TH, taps, tiled, HB)

    in_specs = [pl.BlockSpec((None, C, TH, W), lambda b, h: (b, 0, h, 0))]
    inputs = [x4]
    if tiled:
        RB = TH // HB
        NRB = pl.cdiv(H, HB)
        # Row-halo blocks: the 8-row block just above / below the current tile
        # (same array, clamped index; out-of-image rows are zeroed in-kernel).
        in_specs.append(pl.BlockSpec(
            (None, C, HB, W),
            lambda b, h: (b, 0, jnp.maximum(h * RB - 1, 0), 0)))
        in_specs.append(pl.BlockSpec(
            (None, C, HB, W),
            lambda b, h: (b, 0, jnp.minimum((h + 1) * RB, NRB - 1), 0)))
        inputs += [x4, x4]

    out = pl.pallas_call(
        kernel,
        out_shape=jax.ShapeDtypeStruct((B, C, H, W), x.dtype),
        grid=(B, NH),
        in_specs=in_specs,
        # Note: pipeline_mode=pl.Buffered(3) on this out_spec is an option on
        # v7x if a profile ever shows exposed output DMA; not applied blindly.
        out_specs=pl.BlockSpec((None, C, TH, W), lambda b, h: (b, 0, h, 0)),
        scratch_shapes=[pltpu.VMEM((TH + 2 * pad, W + 2 * pad), jnp.float32)],
        compiler_params=pltpu.CompilerParams(
            dimension_semantics=("parallel", "parallel"),
            vmem_limit_bytes=int(max(32 * 1024 * 1024,
                                     min(vmem_cap * 3 // 4,
                                         100 * 1024 * 1024)))),
    )(*inputs)
    return out.reshape(orig_shape)


def _reference(x, sigma=1.0, kernel_size=5):
    """Pure-JAX reference mirroring torch F.conv2d with the expanded weight."""
    orig_shape = x.shape
    C = x.shape[-3]
    lead = x.shape[:-3]
    B = int(np.prod(lead)) if len(lead) > 0 else 1
    x4 = x.reshape(B, C, x.shape[-2], x.shape[-1])
    st = _gaussian_stencil_2d(sigma, kernel_size)
    w = jnp.broadcast_to(jnp.asarray(st)[None, None],
                         (C, C, kernel_size, kernel_size))
    y = lax.conv_general_dilated(
        x4, w, window_strides=(1, 1), padding="SAME",
        dimension_numbers=("NCHW", "OIHW", "NCHW"),
        precision=lax.Precision.HIGHEST)
    return y.reshape(orig_shape)


if __name__ == "__main__":
    # Test 1: module-default small shape; single row-tile path.
    key = jax.random.PRNGKey(0)
    x = jax.random.normal(key, (2, 4, 16, 16), dtype=jnp.float32)  # (B, C, H, W)
    y = jax.block_until_ready(gaussian_filter_2d(x, sigma=1.0, kernel_size=5))
    y_ref = jax.block_until_ready(_reference(x, sigma=1.0, kernel_size=5))
    assert y.shape == x.shape
    assert np.allclose(np.asarray(y), np.asarray(y_ref), atol=1e-4, rtol=1e-4)

    # Test 2: forces the tiled path (row-halo blocks, cdiv grid, partial last
    # tile since 52 is not a multiple of the 16-row tile, boundary masking).
    x2 = jax.random.normal(jax.random.PRNGKey(0), (1, 3, 52, 24), dtype=jnp.float32)
    y2 = jax.block_until_ready(
        gaussian_filter_2d(x2, sigma=1.5, kernel_size=5, max_tile_rows=16))
    y2_ref = jax.block_until_ready(_reference(x2, sigma=1.5, kernel_size=5))
    assert np.allclose(np.asarray(y2), np.asarray(y2_ref), atol=1e-4, rtol=1e-4)

    # TODO(synk): ndim == 3 (conv3d) variant not implemented; the separable
    # approach extends with a third (depth) tap pass over a depth-halo'd sum.
    print("KERNEL_OK")
</pallas_src>

<mosaic_0001>
module attributes {stable_mosaic.version = 11 : i64} {
  func.func @kernel(%arg0: i32, %arg1: i32, %arg2: memref<1x4x16x16xf32, #tpu.memory_space<vmem>>, %arg3: memref<1x4x16x16xf32, #tpu.memory_space<vmem>>, %arg4: memref<20x20xf32, #tpu.memory_space<vmem>>) attributes {dimension_semantics = [#tpu.dimension_semantics<parallel>, #tpu.dimension_semantics<parallel>], iteration_bounds = array<i64: 2, 1>, scalar_prefetch = 0 : i64, scratch_operands = 1 : i64, tpu.core_type = #tpu.core_type<tc>, window_params = [{transform_indices = @transform_0, window_bounds = array<i64: 1, 4, 16, 16>}, {transform_indices = @transform_1, window_bounds = array<i64: 1, 4, 16, 16>}]} {
    %cst = arith.constant 0.000000e+00 : f32
    %0 = vector.broadcast %cst : f32 to vector<20x2xf32>
    %c0 = arith.constant 0 : index
    %c0_0 = arith.constant 0 : index
    %1 = vector.load %arg4[%c0, %c0_0] : memref<20x20xf32, #tpu.memory_space<vmem>>, vector<20x2xf32>
    tpu.vector_store %arg4[%c0, %c0_0], %0 {strides = array<i32>} : memref<20x20xf32, #tpu.memory_space<vmem>>, vector<20x2xf32>,
    %c0_1 = arith.constant 0 : index
    %c18 = arith.constant 18 : index
    %2 = vector.load %arg4[%c0_1, %c18] : memref<20x20xf32, #tpu.memory_space<vmem>>, vector<20x2xf32>
    tpu.vector_store %arg4[%c0_1, %c18], %0 {strides = array<i32>} : memref<20x20xf32, #tpu.memory_space<vmem>>, vector<20x2xf32>,
    %c0_2 = arith.constant 0 : index
    %c0_3 = arith.constant 0 : index
    %c0_4 = arith.constant 0 : index
    %c0_5 = arith.constant 0 : index
    %3 = vector.load %arg2[%c0_2, %c0_3, %c0_4, %c0_5] : memref<1x4x16x16xf32, #tpu.memory_space<vmem>>, vector<1x1x16x16xf32>
    %4 = vector.shape_cast %3 : vector<1x1x16x16xf32> to vector<16x16xf32>
    %c0_6 = arith.constant 0 : index
    %c1 = arith.constant 1 : index
    %c0_7 = arith.constant 0 : index
    %c0_8 = arith.constant 0 : index
    %5 = vector.load %arg2[%c0_6, %c1, %c0_7, %c0_8] : memref<1x4x16x16xf32, #tpu.memory_space<vmem>>, vector<1x1x16x16xf32>
    %6 = vector.shape_cast %5 : vector<1x1x16x16xf32> to vector<16x16xf32>
    %7 = arith.addf %4, %6 : vector<16x16xf32>
    %c0_9 = arith.constant 0 : index
    %c2 = arith.constant 2 : index
    %c0_10 = arith.constant 0 : index
    %c0_11 = arith.constant 0 : index
    %8 = vector.load %arg2[%c0_9, %c2, %c0_10, %c0_11] : memref<1x4x16x16xf32, #tpu.memory_space<vmem>>, vector<1x1x16x16xf32>
    %9 = vector.shape_cast %8 : vector<1x1x16x16xf32> to vector<16x16xf32>
    %10 = arith.addf %7, %9 : vector<16x16xf32>
    %c0_12 = arith.constant 0 : index
    %c3 = arith.constant 3 : index
    %c0_13 = arith.constant 0 : index
    %c0_14 = arith.constant 0 : index
    %11 = vector.load %arg2[%c0_12, %c3, %c0_13, %c0_14] : memref<1x4x16x16xf32, #tpu.memory_space<vmem>>, vector<1x1x16x16xf32>
    %12 = vector.shape_cast %11 : vector<1x1x16x16xf32> to vector<16x16xf32>
    %13 = arith.addf %10, %12 : vector<16x16xf32>
    %c2_15 = arith.constant 2 : index
    %c2_16 = arith.constant 2 : index
    %14 = vector.load %arg4[%c2_15, %c2_16] : memref<20x20xf32, #tpu.memory_space<vmem>>, vector<16x16xf32>
    tpu.vector_store %arg4[%c2_15, %c2_16], %13 {strides = array<i32>} : memref<20x20xf32, #tpu.memory_space<vmem>>, vector<16x16xf32>,
    %cst_17 = arith.constant 0.000000e+00 : f32
    %15 = vector.broadcast %cst_17 : f32 to vector<2x16xf32>
    %c0_18 = arith.constant 0 : index
    %c2_19 = arith.constant 2 : index
    %16 = vector.load %arg4[%c0_18, %c2_19] : memref<20x20xf32, #tpu.memory_space<vmem>>, vector<2x16xf32>
    tpu.vector_store %arg4[%c0_18, %c2_19], %15 {strides = array<i32>} : memref<20x20xf32, #tpu.memory_space<vmem>>, vector<2x16xf32>,
    %c18_20 = arith.constant 18 : index
    %c2_21 = arith.constant 2 : index
    %17 = vector.load %arg4[%c18_20, %c2_21] : memref<20x20xf32, #tpu.memory_space<vmem>>, vector<2x16xf32>
    tpu.vector_store %arg4[%c18_20, %c2_21], %15 {strides = array<i32>} : memref<20x20xf32, #tpu.memory_space<vmem>>, vector<2x16xf32>,
    %c2_22 = arith.constant 2 : index
    %c0_23 = arith.constant 0 : index
    %18 = vector.load %arg4[%c2_22, %c0_23] : memref<20x20xf32, #tpu.memory_space<vmem>>, vector<8x20xf32>
    %cst_24 = arith.constant 0.402619958 : f32
    %19 = vector.broadcast %cst_24 : f32 to vector<8x20xf32>
    %20 = arith.mulf %19, %18 : vector<8x20xf32>
    %c0_25 = arith.constant 0 : index
    %c0_26 = arith.constant 0 : index
    %21 = vector.load %arg4[%c0_25, %c0_26] : memref<20x20xf32, #tpu.memory_space<vmem>>, vector<8x20xf32>
    %c4 = arith.constant 4 : index
    %c0_27 = arith.constant 0 : index
    %22 = vector.load %arg4[%c4, %c0_27] : memref<20x20xf32, #tpu.memory_space<vmem>>, vector<8x20xf32>
    %23 = arith.addf %21, %22 : vector<8x20xf32>
    %cst_28 = arith.constant 0.054488685 : f32
    %24 = vector.broadcast %cst_28 : f32 to vector<8x20xf32>
    %25 = arith.mulf %24, %23 : vector<8x20xf32>
    %26 = arith.addf %20, %25 : vector<8x20xf32>
    %c1_29 = arith.constant 1 : index
    %c0_30 = arith.constant 0 : index
    %27 = vector.load %arg4[%c1_29, %c0_30] : memref<20x20xf32, #tpu.memory_space<vmem>>, vector<8x20xf32>
    %c3_31 = arith.constant 3 : index
    %c0_32 = arith.constant 0 : index
    %28 = vector.load %arg4[%c3_31, %c0_32] : memref<20x20xf32, #tpu.memory_space<vmem>>, vector<8x20xf32>
    %29 = arith.addf %27, %28 : vector<8x20xf32>
    %cst_33 = arith.constant 0.244201347 : f32
    %30 = vector.broadcast %cst_33 : f32 to vector<8x20xf32>
    %31 = arith.mulf %30, %29 : vector<8x20xf32>
    %32 = arith.addf %26, %31 : vector<8x20xf32>
    %33 = vector.extract_strided_slice %32 {offsets = [0, 2], sizes = [8, 16], strides = [1, 1]} : vector<8x20xf32> to vector<8x16xf32>
    %cst_34 = arith.constant 0.402619958 : f32
    %34 = vector.broadcast %cst_34 : f32 to vector<8x16xf32>
    %35 = arith.mulf %34, %33 : vector<8x16xf32>
    %36 = vector.extract_strided_slice %32 {offsets = [0, 0], sizes = [8, 16], strides = [1, 1]} : vector<8x20xf32> to vector<8x16xf32>
    %37 = vector.extract_strided_slice %32 {offsets = [0, 4], sizes = [8, 16], strides = [1, 1]} : vector<8x20xf32> to vector<8x16xf32>
    %38 = arith.addf %36, %37 : vector<8x16xf32>
    %cst_35 = arith.constant 0.054488685 : f32
    %39 = vector.broadcast %cst_35 : f32 to vector<8x16xf32>
    %40 = arith.mulf %39, %38 : vector<8x16xf32>
    %41 = arith.addf %35, %40 : vector<8x16xf32>
    %42 = vector.extract_strided_slice %32 {offsets = [0, 1], sizes = [8, 16], strides = [1, 1]} : vector<8x20xf32> to vector<8x16xf32>
    %43 = vector.extract_strided_slice %32 {offsets = [0, 3], sizes = [8, 16], strides = [1, 1]} : vector<8x20xf32> to vector<8x16xf32>
    %44 = arith.addf %42, %43 : vector<8x16xf32>
    %cst_36 = arith.constant 0.244201347 : f32
    %45 = vector.broadcast %cst_36 : f32 to vector<8x16xf32>
    %46 = arith.mulf %45, %44 : vector<8x16xf32>
    %47 = arith.addf %41, %46 : vector<8x16xf32>
    %c0_37 = arith.constant 0 : index
    %c0_38 = arith.constant 0 : index
    %c0_39 = arith.constant 0 : index
    %c0_40 = arith.constant 0 : index
    %48 = vector.load %arg3[%c0_37, %c0_38, %c0_39, %c0_40] : memref<1x4x16x16xf32, #tpu.memory_space<vmem>>, vector<1x1x8x16xf32>
    %49 = vector.shape_cast %48 : vector<1x1x8x16xf32> to vector<8x16xf32>
    %50 = vector.shape_cast %47 : vector<8x16xf32> to vector<1x1x8x16xf32>
    tpu.vector_store %arg3[%c0_37, %c0_38, %c0_39, %c0_40], %50 {strides = array<i32>} : memref<1x4x16x16xf32, #tpu.memory_space<vmem>>, vector<1x1x8x16xf32>,
    %c0_41 = arith.constant 0 : index
    %c1_42 = arith.constant 1 : index
    %c0_43 = arith.constant 0 : index
    %c0_44 = arith.constant 0 : index
    %51 = vector.load %arg3[%c0_41, %c1_42, %c0_43, %c0_44] : memref<1x4x16x16xf32, #tpu.memory_space<vmem>>, vector<1x1x8x16xf32>
    %52 = vector.shape_cast %51 : vector<1x1x8x16xf32> to vector<8x16xf32>
    %53 = vector.shape_cast %47 : vector<8x16xf32> to vector<1x1x8x16xf32>
    tpu.vector_store %arg3[%c0_41, %c1_42, %c0_43, %c0_44], %53 {strides = array<i32>} : memref<1x4x16x16xf32, #tpu.memory_space<vmem>>, vector<1x1x8x16xf32>,
    %c0_45 = arith.constant 0 : index
    %c2_46 = arith.constant 2 : index
    %c0_47 = arith.constant 0 : index
    %c0_48 = arith.constant 0 : index
    %54 = vector.load %arg3[%c0_45, %c2_46, %c0_47, %c0_48] : memref<1x4x16x16xf32, #tpu.memory_space<vmem>>, vector<1x1x8x16xf32>
    %55 = vector.shape_cast %54 : vector<1x1x8x16xf32> to vector<8x16xf32>
    %56 = vector.shape_cast %47 : vector<8x16xf32> to vector<1x1x8x16xf32>
    tpu.vector_store %arg3[%c0_45, %c2_46, %c0_47, %c0_48], %56 {strides = array<i32>} : memref<1x4x16x16xf32, #tpu.memory_space<vmem>>, vector<1x1x8x16xf32>,
    %c0_49 = arith.constant 0 : index
    %c3_50 = arith.constant 3 : index
    %c0_51 = arith.constant 0 : index
    %c0_52 = arith.constant 0 : index
    %57 = vector.load %arg3[%c0_49, %c3_50, %c0_51, %c0_52] : memref<1x4x16x16xf32, #tpu.memory_space<vmem>>, vector<1x1x8x16xf32>
    %58 = vector.shape_cast %57 : vector<1x1x8x16xf32> to vector<8x16xf32>
    %59 = vector.shape_cast %47 : vector<8x16xf32> to vector<1x1x8x16xf32>
    tpu.vector_store %arg3[%c0_49, %c3_50, %c0_51, %c0_52], %59 {strides = array<i32>} : memref<1x4x16x16xf32, #tpu.memory_space<vmem>>, vector<1x1x8x16xf32>,
    %c10 = arith.constant 10 : index
    %c0_53 = arith.constant 0 : index
    %60 = vector.load %arg4[%c10, %c0_53] : memref<20x20xf32, #tpu.memory_space<vmem>>, vector<8x20xf32>
    %cst_54 = arith.constant 0.402619958 : f32
    %61 = vector.broadcast %cst_54 : f32 to vector<8x20xf32>
    %62 = arith.mulf %61, %60 : vector<8x20xf32>
    %c8 = arith.constant 8 : index
    %c0_55 = arith.constant 0 : index
    %63 = vector.load %arg4[%c8, %c0_55] : memref<20x20xf32, #tpu.memory_space<vmem>>, vector<8x20xf32>
    %c12 = arith.constant 12 : index
    %c0_56 = arith.constant 0 : index
    %64 = vector.load %arg4[%c12, %c0_56] : memref<20x20xf32, #tpu.memory_space<vmem>>, vector<8x20xf32>
    %65 = arith.addf %63, %64 : vector<8x20xf32>
    %cst_57 = arith.constant 0.054488685 : f32
    %66 = vector.broadcast %cst_57 : f32 to vector<8x20xf32>
    %67 = arith.mulf %66, %65 : vector<8x20xf32>
    %68 = arith.addf %62, %67 : vector<8x20xf32>
    %c9 = arith.constant 9 : index
    %c0_58 = arith.constant 0 : index
    %69 = vector.load %arg4[%c9, %c0_58] : memref<20x20xf32, #tpu.memory_space<vmem>>, vector<8x20xf32>
    %c11 = arith.constant 11 : index
    %c0_59 = arith.constant 0 : index
    %70 = vector.load %arg4[%c11, %c0_59] : memref<20x20xf32, #tpu.memory_space<vmem>>, vector<8x20xf32>
    %71 = arith.addf %69, %70 : vector<8x20xf32>
    %cst_60 = arith.constant 0.244201347 : f32
    %72 = vector.broadcast %cst_60 : f32 to vector<8x20xf32>
    %73 = arith.mulf %72, %71 : vector<8x20xf32>
    %74 = arith.addf %68, %73 : vector<8x20xf32>
    %75 = vector.extract_strided_slice %74 {offsets = [0, 2], sizes = [8, 16], strides = [1, 1]} : vector<8x20xf32> to vector<8x16xf32>
    %cst_61 = arith.constant 0.402619958 : f32
    %76 = vector.broadcast %cst_61 : f32 to vector<8x16xf32>
    %77 = arith.mulf %76, %75 : vector<8x16xf32>
    %78 = vector.extract_strided_slice %74 {offsets = [0, 0], sizes = [8, 16], strides = [1, 1]} : vector<8x20xf32> to vector<8x16xf32>
    %79 = vector.extract_strided_slice %74 {offsets = [0, 4], sizes = [8, 16], strides = [1, 1]} : vector<8x20xf32> to vector<8x16xf32>
    %80 = arith.addf %78, %79 : vector<8x16xf32>
    %cst_62 = arith.constant 0.054488685 : f32
    %81 = vector.broadcast %cst_62 : f32 to vector<8x16xf32>
    %82 = arith.mulf %81, %80 : vector<8x16xf32>
    %83 = arith.addf %77, %82 : vector<8x16xf32>
    %84 = vector.extract_strided_slice %74 {offsets = [0, 1], sizes = [8, 16], strides = [1, 1]} : vector<8x20xf32> to vector<8x16xf32>
    %85 = vector.extract_strided_slice %74 {offsets = [0, 3], sizes = [8, 16], strides = [1, 1]} : vector<8x20xf32> to vector<8x16xf32>
    %86 = arith.addf %84, %85 : vector<8x16xf32>
    %cst_63 = arith.constant 0.244201347 : f32
    %87 = vector.broadcast %cst_63 : f32 to vector<8x16xf32>
    %88 = arith.mulf %87, %86 : vector<8x16xf32>
    %89 = arith.addf %83, %88 : vector<8x16xf32>
    %c0_64 = arith.constant 0 : index
    %c0_65 = arith.constant 0 : index
    %c8_66 = arith.constant 8 : index
    %c0_67 = arith.constant 0 : index
    %90 = vector.load %arg3[%c0_64, %c0_65, %c8_66, %c0_67] : memref<1x4x16x16xf32, #tpu.memory_space<vmem>>, vector<1x1x8x16xf32>
    %91 = vector.shape_cast %90 : vector<1x1x8x16xf32> to vector<8x16xf32>
    %92 = vector.shape_cast %89 : vector<8x16xf32> to vector<1x1x8x16xf32>
    tpu.vector_store %arg3[%c0_64, %c0_65, %c8_66, %c0_67], %92 {strides = array<i32>} : memref<1x4x16x16xf32, #tpu.memory_space<vmem>>, vector<1x1x8x16xf32>,
    %c0_68 = arith.constant 0 : index
    %c1_69 = arith.constant 1 : index
    %c8_70 = arith.constant 8 : index
    %c0_71 = arith.constant 0 : index
    %93 = vector.load %arg3[%c0_68, %c1_69, %c8_70, %c0_71] : memref<1x4x16x16xf32, #tpu.memory_space<vmem>>, vector<1x1x8x16xf32>
    %94 = vector.shape_cast %93 : vector<1x1x8x16xf32> to vector<8x16xf32>
    %95 = vector.shape_cast %89 : vector<8x16xf32> to vector<1x1x8x16xf32>
    tpu.vector_store %arg3[%c0_68, %c1_69, %c8_70, %c0_71], %95 {strides = array<i32>} : memref<1x4x16x16xf32, #tpu.memory_space<vmem>>, vector<1x1x8x16xf32>,
    %c0_72 = arith.constant 0 : index
    %c2_73 = arith.constant 2 : index
    %c8_74 = arith.constant 8 : index
    %c0_75 = arith.constant 0 : index
    %96 = vector.load %arg3[%c0_72, %c2_73, %c8_74, %c0_75] : memref<1x4x16x16xf32, #tpu.memory_space<vmem>>, vector<1x1x8x16xf32>
    %97 = vector.shape_cast %96 : vector<1x1x8x16xf32> to vector<8x16xf32>
    %98 = vector.shape_cast %89 : vector<8x16xf32> to vector<1x1x8x16xf32>
    tpu.vector_store %arg3[%c0_72, %c2_73, %c8_74, %c0_75], %98 {strides = array<i32>} : memref<1x4x16x16xf32, #tpu.memory_space<vmem>>, vector<1x1x8x16xf32>,
    %c0_76 = arith.constant 0 : index
    %c3_77 = arith.constant 3 : index
    %c8_78 = arith.constant 8 : index
    %c0_79 = arith.constant 0 : index
    %99 = vector.load %arg3[%c0_76, %c3_77, %c8_78, %c0_79] : memref<1x4x16x16xf32, #tpu.memory_space<vmem>>, vector<1x1x8x16xf32>
    %100 = vector.shape_cast %99 : vector<1x1x8x16xf32> to vector<8x16xf32>
    %101 = vector.shape_cast %89 : vector<8x16xf32> to vector<1x1x8x16xf32>
    tpu.vector_store %arg3[%c0_76, %c3_77, %c8_78, %c0_79], %101 {strides = array<i32>} : memref<1x4x16x16xf32, #tpu.memory_space<vmem>>, vector<1x1x8x16xf32>,
    return
  }
  func.func @transform_0(%arg0: i32, %arg1: i32) -> (i32, i32, i32, i32) {
    %c0_i32 = arith.constant 0 : i32
    %c0_i32_0 = arith.constant 0 : i32
    %c0_i32_1 = arith.constant 0 : i32
    return %arg0, %c0_i32, %arg1, %c0_i32_0 : i32, i32, i32, i32
  }
  func.func @transform_1(%arg0: i32, %arg1: i32) -> (i32, i32, i32, i32) {
    %c0_i32 = arith.constant 0 : i32
    %c0_i32_0 = arith.constant 0 : i32
    %c0_i32_1 = arith.constant 0 : i32
    return %arg0, %c0_i32, %arg1, %c0_i32_0 : i32, i32, i32, i32
  }
}

</mosaic_0001>

<llo_original>
// kernel: tpu_custom_call.1
$region0: #{tpu_custom_call.1}
  #allocation0 [shape = 'u32[]', space=smem, size = 0x4, offset = 0x4, fixed_abs, tag = 'smem constant byte address 0x4 - core index']
  #allocation1 [shape = 'u32[144,128]{1,0:T(1,128)}', space=vmem, size = 0x12000, scoped, tag = 'internal scratch']
  #allocation2 [shape = 'f32[20,20]{1,0:T(8,128)}', space=vmem, size = 0x3000, scoped, tag = 'scratch operand']
  %s0 = inlined_call_operand.hbm [shape: f32[2,4,16,16], index: 0, kind: input, shape index: {}]
  %s1 = inlined_call_operand.hbm [shape: f32[2,4,16,16], index: 1, kind: output, shape index: {}]
  %s2 = sld [smem:[#allocation0]]
  $region41: #{tpu_custom_call.1} parent=0
    _
  %s4 = ssub.s32 1, %s2
  %s5 = scalar_select 0, %s4, %s2
  $region1: #{tpu_custom_call.1} parent=0
    #allocation3 [shape = 'u8[65536]{0}', space=vmem, size = 0x10000, scoped, tag = 'input window, operand 0']
    #allocation4 [shape = 's32[2]{0}', space=sflag, size = 0x8, scoped, tag = 'scoped memory for tpu_custom_call.1']
    #allocation5 [shape = 's32[2]{0}', space=sflag, size = 0x8, scoped, tag = 'scoped memory for tpu_custom_call.1']
    #allocation6 [shape = 'u8[65536]{0}', space=vmem, size = 0x10000, scoped, tag = 'output window, operand 0']
    %6 = vsyncpa [#allocation4], 0
    %s7 = scalar_lea.sflag [#allocation4], 1
    %8 = vsyncpa %s7, 0
    %9 = vsyncpa [#allocation5], 0
    %s10 = scalar_lea.sflag [#allocation5], 1
    %11 = vsyncpa %s10, 0
    loop: start=0, step=1, limit=4
    $region2: #{tpu_custom_call.1} parent=1 // loop_pre_header
      _
    $region3: #{tpu_custom_call.1} parent=1 // loop_header
      %s13 = sphi 0, %s17
      %p14 = scmp.ge.s32.totalorder %s13, 4
      %s20 = sphi 0, %s32
      %s21 = sphi 0, %s28
      %s22 = sphi 0, %s20
      %s23 = sphi 0, %s21
      %s24 = sphi 0, %s22
      %s25 = sphi 0, %s23
      %s37 = sphi 0, %s39
      %s40 = sphi 0, %s37
      %s41 = sphi 0, %s40
      %s57 = sphi 0, %s41
      %s65 = sphi 0, %s67
      %s68 = sphi 0, %s65
      %s69 = sphi 0, %s68
      %s85 = sphi 0, %s69
    $region4: #{tpu_custom_call.1} parent=1 // loop_header_branch
      %16 = sbr.rel (%p14) target = $region8
    $region5: #{tpu_custom_call.1} parent=1 // loop_body
      %s18 = ssub.s32 %s13, 1
      %s19 = ssub.s32 %s13, 2
      %s26 = sadd.s32 1, %s21
      %p27 = scmp.ge.s32.totalorder %s26, 1
      %s28 = scalar_select %p27, 0, %s26
      %s29 = sadd.s32 1, %s20
      %s30 = scalar_select %p27, %s29, %s20
      %p31 = scmp.ge.s32.totalorder %s30, 2
      %s32 = scalar_select %p31, 0, %s30
      %s33 = ssub.s32 %s20, %s32
      %s34 = ssub.s32 %s21, %s28
      %s35 = sor.u32 %s33, %s34
      %p36 = scmp.eq.s32.totalorder %s35, 0
      %s38 = sadd.s32 %s37, 1
      %s39 = scalar_select %p36, %s37, %s38
      %p42 = pneg %p36
      %p43 = scmp.eq.s32.totalorder %s13, 1
      %p44 = por %p42, %p43
      %p45 = scmp.ne.s32.totalorder %s37, %s40
      %p46 = scmp.eq.s32.totalorder %s13, 0
      %p47 = por %p45, %p46
      %p48 = scmp.ne.s32.totalorder %s37, %s40
      %p49 = scmp.eq.s32.totalorder %s18, 1
      %p50 = por %p48, %p49
      %p51 = scmp.ne.s32.totalorder %s40, %s41
      %p52 = scmp.eq.s32.totalorder %s18, 0
      %p53 = por %p51, %p52
      %p54 = scmp.ne.s32.totalorder %s40, %s41
      %p55 = scmp.eq.s32.totalorder %s19, 1
      %p56 = por %p54, %p55
      %p58 = scmp.ne.s32.totalorder %s41, %s57
      %p59 = scmp.eq.s32.totalorder %s19, 0
      %p60 = por %p58, %p59
      %s61 = ssub.s32 %s20, %s32
      %s62 = ssub.s32 %s21, %s28
      %s63 = sor.u32 %s61, %s62
      %p64 = scmp.eq.s32.totalorder %s63, 0
      %s66 = sadd.s32 %s65, 1
      %s67 = scalar_select %p64, %s65, %s66
      %p70 = pneg %p64
      %p71 = scmp.eq.s32.totalorder %s13, 1
      %p72 = por %p70, %p71
      %p73 = scmp.ne.s32.totalorder %s65, %s68
      %p74 = scmp.eq.s32.totalorder %s13, 0
      %p75 = por %p73, %p74
      %p76 = scmp.ne.s32.totalorder %s65, %s68
      %p77 = scmp.eq.s32.totalorder %s18, 1
      %p78 = por %p76, %p77
      %p79 = scmp.ne.s32.totalorder %s68, %s69
      %p80 = scmp.eq.s32.totalorder %s18, 0
      %p81 = por %p79, %p80
      %p82 = scmp.ne.s32.totalorder %s68, %s69
      %p83 = scmp.eq.s32.totalorder %s19, 1
      %p84 = por %p82, %p83
      %p86 = scmp.ne.s32.totalorder %s69, %s85
      %p87 = scmp.eq.s32.totalorder %s19, 0
      %p88 = por %p86, %p87
      %p89 = scmp.le.s32.totalorder 1, %s13
      %p90 = scmp.lt.s32.totalorder %s13, 3
      %p91 = pnand %p89, %p90
      %p92 = pneg %p91
      // Predicated region
      $region9: #{tpu_custom_call.1} parent=5 // pred_check
        _
      $region10: #{tpu_custom_call.1} parent=5 // pred_check_branch
        %94 = sbr.rel (%p91) target = $region12
      $region11: #{tpu_custom_call.1} parent=5 // pred_region
        %s95 = ssub.s32 %s13, 1
      $region12: #{tpu_custom_call.1} parent=5 // pred_fallthru
        _
      %p96 = scmp.lt.s32.totalorder %s13, 2
      // Predicated region
      $region13: #{tpu_custom_call.1} parent=5 // pred_check
        %p97 = pneg %p96
      $region14: #{tpu_custom_call.1} parent=5 // pred_check_branch
        %99 = sbr.rel (%p97) target = $region16
      $region15: #{tpu_custom_call.1} parent=5 // pred_region
        // Predicated region
        $region17: #{tpu_custom_call.1} parent=15 // pred_check
          %p100 = pneg %p47
        $region18: #{tpu_custom_call.1} parent=15 // pred_check_branch
          %102 = sbr.rel (%p100) target = $region20
        $region19: #{tpu_custom_call.1} parent=15 // pred_region
          %s103 = sand.u32 %s37, 1
          %s104 = scalar_lea.sflag [#allocation4], %s103
          %s105 = sand.u32 %s37, 1
          %s106 = smul.addr %s105, 64
          %s107 = scalar_lea.vmem [#allocation3], %s106
          %s108 = smul.u32 2, %s21
          %s110 = ssub.s32 1024, 1024
          %111 = vsyncadd %s104, %s110
          %s112 = smul.addr %s20, 8
          %s113 = sadd.s32 %s108, %s112
          %s114 = smul.addr %s113, 128
          %s115 = scalar_lea.hbm %s0, %s114
          %s116 = sshll.u32 %s107, 4
          %s117 = int_to_ptr.vmem [resolvable:$true] %s116
          %122 = dma.hbm_to_vmem [thread:$0]  %s115, 1024, %s117, %s104, 128, 128, 8
        $region20: #{tpu_custom_call.1} parent=15 // pred_fallthru
          _
      $region16: #{tpu_custom_call.1} parent=5 // pred_fallthru
        _
      %p123 = scmp.le.s32.totalorder 1, %s13
      %p124 = scmp.lt.s32.totalorder %s13, 3
      %p125 = pnand %p123, %p124
      %p126 = pneg %p125
      // Predicated region
      $region21: #{tpu_custom_call.1} parent=5 // pred_check
        _
      $region22: #{tpu_custom_call.1} parent=5 // pred_check_branch
        %128 = sbr.rel (%p125) target = $region24
      $region23: #{tpu_custom_call.1} parent=5 // pred_region
        %s129 = ssub.s32 %s13, 1
        %s130 = sand.u32 %s40, 1
        %s131 = scalar_lea.sflag [#allocation4], %s130
        %s132 = sand.u32 %s40, 1
        %s133 = smul.addr %s132, 64
        %s134 = scalar_lea.vmem [#allocation3], %s133
        // Predicated region
        $region25: #{tpu_custom_call.1} parent=23 // pred_check
          %p135 = pneg %p53
        $region26: #{tpu_custom_call.1} parent=23 // pred_check_branch
          %137 = sbr.rel (%p135) target = $region28
        $region27: #{tpu_custom_call.1} parent=23 // pred_region
          %138 = dma.done %s131, 1024
        $region28: #{tpu_custom_call.1} parent=23 // pred_fallthru
          _
        %s139 = sand.u32 %s40, 1
        %s140 = scalar_lea.sflag [#allocation4], %s139
        %s141 = sand.u32 %s40, 1
        %s142 = smul.addr %s141, 64
        %s143 = scalar_lea.vmem [#allocation3], %s142
        %p144 = pneg %p53
        %p145 = pneg %p50
        %p146 = pneg %p81
        %p147 = pneg %p78
        %s148 = sand.u32 %s68, 1
        %s149 = scalar_lea.sflag [#allocation5], %s148
        %s150 = sand.u32 %s68, 1
        %s151 = smul.addr %s150, 64
        %s152 = scalar_lea.vmem [#allocation6], %s151
        %s153 = smul.u32 2, %s23
        %s154 = smul.u32 2, %s23
        %vm155 = vcmask 15360
        %156 = vst.msk [vmem:[#allocation2] sm:$0xff] %vm155, 0.0
        %157 = vst.msk [vmem:[#allocation2 + $0x8] sm:$0xff] %vm155, 0.0
        %vm158 = vcmask 11264
        %159 = vst.msk [vmem:[#allocation2 + $0x10] sm:$0xf] %vm158, 0.0
        %vm160 = vcmask 162960
        %161 = vst.msk [vmem:[#allocation2] sm:$0xff] %vm160, 0.0
        %162 = vst.msk [vmem:[#allocation2 + $0x8] sm:$0xff] %vm160, 0.0
        %vm163 = vcmask 158864
        %164 = vst.msk [vmem:[#allocation2 + $0x10] sm:$0xf] %vm163, 0.0
        %v165 = vld [vmem:[%s134] sm:$0xff]
        %v166 = vld [vmem:[%s134 + $0x8] sm:$0xff]
        %s167 = scalar_lea.vmem %s134, 16 [#allocation3]
        %v168 = vld [vmem:[%s167] sm:$0xff]
        %v169 = vld [vmem:[%s167 + $0x8] sm:$0xff]
        %v170 = vadd.f32 %v165, %v168
        %v171 = vadd.f32 %v166, %v169
        %s172 = scalar_lea.vmem %s134, 32 [#allocation3]
        %v173 = vld [vmem:[%s172] sm:$0xff]
        %v174 = vld [vmem:[%s172 + $0x8] sm:$0xff]
        %v175 = vadd.f32 %v170, %v173
        %v176 = vadd.f32 %v171, %v174
        %s177 = scalar_lea.vmem %s134, 48 [#allocation3]
        %v178 = vld [vmem:[%s177] sm:$0xff]
        %v179 = vld [vmem:[%s177 + $0x8] sm:$0xff]
        %v180 = vadd.f32 %v175, %v178
        %v181 = vadd.f32 %v176, %v179
        %184 = vrot.lane.b32.xlu0 %v180, 2
        %v185 = vpop.permute.xlu0 %184
        %186 = vrot.lane.b32.xlu0 %v181, 2
        %v187 = vpop.permute.xlu0 %186
        %vm190 = vcmask 146448
        %191 = vst.msk [vmem:[#allocation2 + $0x2] sm:$0xff] %vm190, %v185
        %192 = vst.msk [vmem:[#allocation2 + $0xa] sm:$0xff] %vm190, %v187
        %vm193 = vcmask 140304
        %194 = vst.msk [vmem:[#allocation2] sm:$0x3] %vm193, 0.0
        %195 = vst.msk [vmem:[#allocation2 + $0x12] sm:$0x3] %vm193, 0.0
        %v196 = vld [vmem:[#allocation2 + $0x2] sm:$0xff]
        %v197 = vmul.f32 %v196, 0.40261996
        %v198 = vld [vmem:[#allocation2] sm:$0xff]
        %v199 = vld [vmem:[#allocation2 + $0x4] sm:$0xff]
        %v200 = vadd.f32 %v198, %v199
        %v201 = vmul.f32 %v200, 0.054488685
        %v202 = vadd.f32 %v197, %v201
        %v203 = vld [vmem:[#allocation2 + $0x1] sm:$0xff]
        %v204 = vld [vmem:[#allocation2 + $0x3] sm:$0xff]
        %v205 = vadd.f32 %v203, %v204
        %v206 = vmul.f32 %v205, 0.24420135
        %v207 = vadd.f32 %v202, %v206
        %v208 = vmul.f32 %v207, 0.40261996
        %210 = vrot.lane.b32.xlu0 %v207, 124
        %v211 = vpop.permute.xlu0 %210
        %v213 = vadd.f32 %v207, %v211
        %v214 = vmul.f32 %v213, 0.054488685
        %216 = vrot.lane.b32.xlu0 %v214, 2
        %v217 = vpop.permute.xlu0 %216
        %v219 = vadd.f32 %v208, %v217
        %220 = vrot.lane.b32.xlu0 %v207, 126
        %v221 = vpop.permute.xlu0 %220
        %v223 = vadd.f32 %v207, %v221
        %v224 = vmul.f32 %v223, 0.24420135
        %226 = vrot.lane.b32.xlu0 %v224, 1
        %v227 = vpop.permute.xlu0 %226
        %v229 = vadd.f32 %v219, %v227
        %231 = vrot.lane.b32.xlu0 %v229, 126
        %v232 = vpop.permute.xlu0 %231
        %vm234 = vcmask 130048
        %235 = vst.msk [vmem:[%s152] sm:$0xff] %vm234, %v232
        %s236 = scalar_lea.vmem %s152, 16 [#allocation6]
        %237 = vst.msk [vmem:[%s236] sm:$0xff] %vm234, %v232
        %s238 = scalar_lea.vmem %s152, 32 [#allocation6]
        %239 = vst.msk [vmem:[%s238] sm:$0xff] %vm234, %v232
        %s240 = scalar_lea.vmem %s152, 48 [#allocation6]
        %241 = vst.msk [vmem:[%s240] sm:$0xff] %vm234, %v232
        %v242 = vld [vmem:[#allocation2 + $0xa] sm:$0xff]
        %v243 = vmul.f32 %v242, 0.40261996
        %v244 = vld [vmem:[#allocation2 + $0x8] sm:$0xff]
        %v245 = vld [vmem:[#allocation2 + $0xc] sm:$0xff]
        %v246 = vadd.f32 %v244, %v245
        %v247 = vmul.f32 %v246, 0.054488685
        %v248 = vadd.f32 %v243, %v247
        %v249 = vld [vmem:[#allocation2 + $0x9] sm:$0xff]
        %v250 = vld [vmem:[#allocation2 + $0xb] sm:$0xff]
        %v251 = vadd.f32 %v249, %v250
        %v252 = vmul.f32 %v251, 0.24420135
        %v253 = vadd.f32 %v248, %v252
        %v254 = vmul.f32 %v253, 0.40261996
        %256 = vrot.lane.b32.xlu0 %v253, 124
        %v257 = vpop.permute.xlu0 %256
        %v259 = vadd.f32 %v253, %v257
        %v260 = vmul.f32 %v259, 0.054488685
        %262 = vrot.lane.b32.xlu0 %v260, 2
        %v263 = vpop.permute.xlu0 %262
        %v265 = vadd.f32 %v254, %v263
        %266 = vrot.lane.b32.xlu0 %v253, 126
        %v267 = vpop.permute.xlu0 %266
        %v269 = vadd.f32 %v253, %v267
        %v270 = vmul.f32 %v269, 0.24420135
        %272 = vrot.lane.b32.xlu0 %v270, 1
        %v273 = vpop.permute.xlu0 %272
        %v275 = vadd.f32 %v265, %v273
        %277 = vrot.lane.b32.xlu0 %v275, 126
        %v278 = vpop.permute.xlu0 %277
        %280 = vst.msk [vmem:[%s152 + $0x8] sm:$0xff] %vm234, %v278
        %281 = vst.msk [vmem:[%s236 + $0x8] sm:$0xff] %vm234, %v278
        %282 = vst.msk [vmem:[%s238 + $0x8] sm:$0xff] %vm234, %v278
        %283 = vst.msk [vmem:[%s240 + $0x8] sm:$0xff] %vm234, %v278
        %s284 = sand.u32 %s68, 1
        %s285 = scalar_lea.sflag [#allocation5], %s284
        %s286 = sand.u32 %s68, 1
        %s287 = smul.addr %s286, 64
        %s288 = scalar_lea.vmem [#allocation6], %s287
        // Predicated region
        $region29: #{tpu_custom_call.1} parent=23 // pred_check
          %p289 = pneg %p78
        $region30: #{tpu_custom_call.1} parent=23 // pred_check_branch
          %291 = sbr.rel (%p289) target = $region32
        $region31: #{tpu_custom_call.1} parent=23 // pred_region
          %s292 = smul.u32 2, %s23
          %s294 = ssub.s32 1024, 1024
          %295 = vsyncadd %s285, %s294
          %s296 = smul.addr %s22, 8
          %s297 = sadd.s32 %s292, %s296
          %s298 = smul.addr %s297, 128
          %s299 = scalar_lea.hbm %s1, %s298
          %s300 = sshll.u32 %s288, 4
          %s301 = int_to_ptr.vmem [resolvable:$true] %s300
          %306 = dma.vmem_to_hbm [thread:$0]  %s301, 1024, %s299, %s285, 128, 128, 8
        $region32: #{tpu_custom_call.1} parent=23 // pred_fallthru
          _
      $region24: #{tpu_custom_call.1} parent=5 // pred_fallthru
        _
      %p307 = scmp.le.s32.totalorder 2, %s13
      // Predicated region
      $region33: #{tpu_custom_call.1} parent=5 // pred_check
        %p308 = pneg %p307
      $region34: #{tpu_custom_call.1} parent=5 // pred_check_branch
        %310 = sbr.rel (%p308) target = $region36
      $region35: #{tpu_custom_call.1} parent=5 // pred_region
        %s311 = ssub.s32 %s13, 2
        // Predicated region
        $region37: #{tpu_custom_call.1} parent=35 // pred_check
          %p312 = pneg %p84
        $region38: #{tpu_custom_call.1} parent=35 // pred_check_branch
          %314 = sbr.rel (%p312) target = $region40
        $region39: #{tpu_custom_call.1} parent=35 // pred_region
          %s315 = sand.u32 %s69, 1
          %s316 = scalar_lea.sflag [#allocation5], %s315
          %s317 = sand.u32 %s69, 1
          %s318 = smul.addr %s317, 64
          %s319 = scalar_lea.vmem [#allocation6], %s318
          %320 = dma.done %s316, 1024
        $region40: #{tpu_custom_call.1} parent=35 // pred_fallthru
          _
      $region36: #{tpu_custom_call.1} parent=5 // pred_fallthru
        _
    $region6: #{tpu_custom_call.1} parent=1 // loop_footer
      %s17 = sadd.s32 1, %s13
    $region7: #{tpu_custom_call.1} parent=1 // loop_footer_branch
      %12 = sbr.rel target = $region3
    $region8: #{tpu_custom_call.1} parent=1 // loop_exit
      _
    %321 = vsyncpa [#allocation4], 1
    %s322 = scalar_lea.sflag [#allocation4], 1
    %323 = vsyncpa %s322, 1
    %324 = vsyncpa [#allocation5], 1
    %s325 = scalar_lea.sflag [#allocation5], 1
    %326 = vsyncpa %s325, 1

</llo_original>
